<compile_context>
chip_gen: v7x
topology: tpu7x:2x2x1
jax: 0.10.0
libtpu: 0.0.40
codegen_flags: <defaults>
</compile_context>

<pallas_src>
import functools
import math

import jax
import jax.numpy as jnp
from jax import lax
from jax.experimental import pallas as pl
from jax.experimental.pallas import tpu as pltpu

NEG_SLOPE = 0.01      # torch.nn.LeakyReLU default
BN_EPS = 1e-5         # torch.nn.BatchNorm1d default
K1, K2 = 11, 7        # kernel sizes from the module
PAD1, PAD2 = K1 // 2, K2 // 2
LANE = 128


def _round_up(n, m):
    return ((n + m - 1) // m) * m


# ----------------------------------------------------------------------------
# Fused Pallas kernel: conv1 + BN + LeakyReLU + conv2 + BN + LeakyReLU
# ----------------------------------------------------------------------------
def _double_conv_kernel(x_ref, w1_ref, s1_ref, t1_ref, w2_ref, s2_ref, t2_ref,
                        o_ref, slab1_ref, ybuf_ref, slab2_ref,
                        *, cin, cmid, cout, l_pad, l_valid):
    # ---- conv1 as one tap-fused MXU matmul ---------------------------------
    x = x_ref[0]                                        # (cin, l_pad + K1 - 1), zero padded
    for k in range(K1):                                 # build (K1*cin, l_pad) slab once
        slab1_ref[k * cin:(k + 1) * cin, :] = x[:, k:k + l_pad]
    y = jnp.dot(w1_ref[...], slab1_ref[...],
                preferred_element_type=jnp.float32)     # (cmid, l_pad)
    y = y * s1_ref[...] + t1_ref[...]                   # folded BatchNorm (eval)
    y = jnp.where(y >= 0, y, NEG_SLOPE * y)             # LeakyReLU

    # zero the lane-padding columns so conv2 sees PyTorch's zero padding
    col = lax.broadcasted_iota(jnp.int32, (cmid, l_pad), 1)
    y = jnp.where(col < l_valid, y, 0.0)

    # ---- conv2 as one tap-fused MXU matmul ---------------------------------
    ybuf_ref[...] = jnp.zeros_like(ybuf_ref)            # (cmid, l_pad + K2 - 1)
    ybuf_ref[:, PAD2:PAD2 + l_pad] = y                  # centre = activation, edges = 0
    for k in range(K2):                                 # build (K2*cmid, l_pad) slab once
        slab2_ref[k * cmid:(k + 1) * cmid, :] = ybuf_ref[:, k:k + l_pad]
    z = jnp.dot(w2_ref[...], slab2_ref[...],
                preferred_element_type=jnp.float32)     # (cout, l_pad)
    z = z * s2_ref[...] + t2_ref[...]                   # folded BatchNorm (eval)
    o_ref[0] = jnp.where(z >= 0, z, NEG_SLOPE * z)      # LeakyReLU, lane-dense store


# ----------------------------------------------------------------------------
# Wrapper
# ----------------------------------------------------------------------------
def double_conv(x, params):
    """x: (B, Cin, L) float32 -> (B, Cout, L) float32 (eval-mode DoubleConv)."""
    w1, s1, t1 = params["w1"], params["s1"], params["t1"]
    w2, s2, t2 = params["w2"], params["s2"], params["t2"]
    B, cin, L = x.shape
    cmid = w1.shape[0]
    cout = w2.shape[0]

    l_pad = max(LANE, _round_up(L, LANE))               # lane-dense length
    lin_pad = l_pad + K1 - 1                            # room for all K1 shifted views

    # zero-pad input: left pad PAD1, right pad to lin_pad (matches Conv1d padding=5)
    x_padded = jnp.zeros((B, cin, lin_pad), jnp.float32)
    x_padded = x_padded.at[:, :, PAD1:PAD1 + L].set(x.astype(jnp.float32))

    # tap-fused weight layouts: row index = k * Cin + c
    w1_r = jnp.transpose(w1, (0, 2, 1)).reshape(cmid, K1 * cin).astype(jnp.float32)
    w2_r = jnp.transpose(w2, (0, 2, 1)).reshape(cout, K2 * cmid).astype(jnp.float32)

    s1_2d = s1.reshape(cmid, 1).astype(jnp.float32)
    t1_2d = t1.reshape(cmid, 1).astype(jnp.float32)
    s2_2d = s2.reshape(cout, 1).astype(jnp.float32)
    t2_2d = t2.reshape(cout, 1).astype(jnp.float32)

    kern = functools.partial(_double_conv_kernel, cin=cin, cmid=cmid, cout=cout,
                             l_pad=l_pad, l_valid=L)

    out = pl.pallas_call(
        kern,
        out_shape=jax.ShapeDtypeStruct((B, cout, l_pad), jnp.float32),
        grid=(B,),
        in_specs=[
            pl.BlockSpec((1, cin, lin_pad), lambda b: (b, 0, 0)),
            pl.BlockSpec((cmid, K1 * cin), lambda b: (0, 0)),
            pl.BlockSpec((cmid, 1), lambda b: (0, 0)),
            pl.BlockSpec((cmid, 1), lambda b: (0, 0)),
            pl.BlockSpec((cout, K2 * cmid), lambda b: (0, 0)),
            pl.BlockSpec((cout, 1), lambda b: (0, 0)),
            pl.BlockSpec((cout, 1), lambda b: (0, 0)),
        ],
        out_specs=pl.BlockSpec((1, cout, l_pad), lambda b: (b, 0, 0)),
        scratch_shapes=[
            pltpu.VMEM((K1 * cin, l_pad), jnp.float32),       # slab for conv1
            pltpu.VMEM((cmid, l_pad + K2 - 1), jnp.float32),  # padded intermediate
            pltpu.VMEM((K2 * cmid, l_pad), jnp.float32),      # slab for conv2
        ],
        compiler_params=pltpu.CompilerParams(dimension_semantics=("parallel",)),
    )(x_padded, w1_r, s1_2d, t1_2d, w2_r, s2_2d, t2_2d)

    return out[:, :, :L]


# ----------------------------------------------------------------------------
# Parameter construction (eval-mode BN folded into scale & shift)
# ----------------------------------------------------------------------------
def fold_bn(gamma, beta, mean, var):
    scale = gamma / jnp.sqrt(var + BN_EPS)
    shift = beta - mean * scale
    return scale, shift


def init_params(key, cin, cout, cmid=None):
    if cmid is None:
        cmid = cout                                      # mid_channels default
    ks = jax.random.split(key, 10)

    def u(k, shape, lo, hi):
        return jax.random.uniform(k, shape, jnp.float32, lo, hi)

    b1 = 1.0 / math.sqrt(cin * K1)
    w1 = u(ks[0], (cmid, cin, K1), -b1, b1)
    s1, t1 = fold_bn(u(ks[1], (cmid,), 0.5, 1.5), u(ks[2], (cmid,), -0.1, 0.1),
                     u(ks[3], (cmid,), -0.1, 0.1), u(ks[4], (cmid,), 0.5, 1.5))

    b2 = 1.0 / math.sqrt(cmid * K2)
    w2 = u(ks[5], (cout, cmid, K2), -b2, b2)
    s2, t2 = fold_bn(u(ks[6], (cout,), 0.5, 1.5), u(ks[7], (cout,), -0.1, 0.1),
                     u(ks[8], (cout,), -0.1, 0.1), u(ks[9], (cout,), 0.5, 1.5))

    return {"w1": w1, "s1": s1, "t1": t1, "w2": w2, "s2": s2, "t2": t2}


# ----------------------------------------------------------------------------
# Pure-JAX reference (same eval semantics) for validation
# ----------------------------------------------------------------------------
def reference_double_conv(x, params):
    def conv_same(h, w, pad):
        return lax.conv_general_dilated(
            h, w, window_strides=(1,), padding=[(pad, pad)],
            dimension_numbers=("NCH", "OIH", "NCH"))

    y = conv_same(x, params["w1"], PAD1)
    y = y * params["s1"][None, :, None] + params["t1"][None, :, None]
    y = jnp.where(y >= 0, y, NEG_SLOPE * y)
    z = conv_same(y, params["w2"], PAD2)
    z = z * params["s2"][None, :, None] + params["t2"][None, :, None]
    return jnp.where(z >= 0, z, NEG_SLOPE * z)


if __name__ == "__main__":
    key = jax.random.PRNGKey(0)
    k_x, k_p = jax.random.split(key)

    B, CIN, COUT, L = 2, 4, 8, 200                      # small shapes (L padded to 256 inside)
    x = jax.random.normal(k_x, (B, CIN, L), dtype=jnp.float32)
    params = init_params(k_p, CIN, COUT)

    fwd = jax.jit(double_conv)
    out = fwd(x, params)
    out = jax.block_until_ready(out)

    ref = reference_double_conv(x, params)

    assert out.shape == (B, COUT, L)
    assert bool(jnp.all(jnp.isfinite(out)))
    assert bool(jnp.allclose(out, ref, atol=1e-3, rtol=1e-3))
    print("KERNEL_OK")
</pallas_src>

<mosaic_0001>
module attributes {stable_mosaic.version = 11 : i64} {
  func.func @_double_conv_kernel(%arg0: i32, %arg1: memref<1x4x266xf32, #tpu.memory_space<vmem>>, %arg2: memref<8x44xf32, #tpu.memory_space<vmem>>, %arg3: memref<8x1xf32, #tpu.memory_space<vmem>>, %arg4: memref<8x1xf32, #tpu.memory_space<vmem>>, %arg5: memref<8x56xf32, #tpu.memory_space<vmem>>, %arg6: memref<8x1xf32, #tpu.memory_space<vmem>>, %arg7: memref<8x1xf32, #tpu.memory_space<vmem>>, %arg8: memref<1x8x256xf32, #tpu.memory_space<vmem>>, %arg9: memref<44x256xf32, #tpu.memory_space<vmem>>, %arg10: memref<8x262xf32, #tpu.memory_space<vmem>>, %arg11: memref<56x256xf32, #tpu.memory_space<vmem>>) attributes {dimension_semantics = [#tpu.dimension_semantics<parallel>], iteration_bounds = array<i64: 2>, scalar_prefetch = 0 : i64, scratch_operands = 3 : i64, tpu.core_type = #tpu.core_type<tc>, window_params = [{transform_indices = @transform_0, window_bounds = array<i64: 1, 4, 266>}, {pipeline_mode = #tpu.pipeline_mode<synchronous>, transform_indices = @transform_1, window_bounds = array<i64: 8, 44>}, {pipeline_mode = #tpu.pipeline_mode<synchronous>, transform_indices = @transform_2, window_bounds = array<i64: 8, 1>}, {pipeline_mode = #tpu.pipeline_mode<synchronous>, transform_indices = @transform_3, window_bounds = array<i64: 8, 1>}, {pipeline_mode = #tpu.pipeline_mode<synchronous>, transform_indices = @transform_4, window_bounds = array<i64: 8, 56>}, {pipeline_mode = #tpu.pipeline_mode<synchronous>, transform_indices = @transform_5, window_bounds = array<i64: 8, 1>}, {pipeline_mode = #tpu.pipeline_mode<synchronous>, transform_indices = @transform_6, window_bounds = array<i64: 8, 1>}, {transform_indices = @transform_7, window_bounds = array<i64: 1, 8, 256>}]} {
    %c0 = arith.constant 0 : index
    %c0_0 = arith.constant 0 : index
    %c0_1 = arith.constant 0 : index
    %0 = vector.load %arg1[%c0, %c0_0, %c0_1] : memref<1x4x266xf32, #tpu.memory_space<vmem>>, vector<1x4x266xf32>
    %1 = vector.shape_cast %0 : vector<1x4x266xf32> to vector<4x266xf32>
    %2 = vector.extract_strided_slice %1 {offsets = [0, 0], sizes = [4, 256], strides = [1, 1]} : vector<4x266xf32> to vector<4x256xf32>
    %c0_2 = arith.constant 0 : index
    %c0_3 = arith.constant 0 : index
    %3 = vector.load %arg9[%c0_2, %c0_3] : memref<44x256xf32, #tpu.memory_space<vmem>>, vector<4x256xf32>
    tpu.vector_store %arg9[%c0_2, %c0_3], %2 {strides = array<i32>} : memref<44x256xf32, #tpu.memory_space<vmem>>, vector<4x256xf32>,
    %4 = vector.extract_strided_slice %1 {offsets = [0, 1], sizes = [4, 256], strides = [1, 1]} : vector<4x266xf32> to vector<4x256xf32>
    %c4 = arith.constant 4 : index
    %c0_4 = arith.constant 0 : index
    %5 = vector.load %arg9[%c4, %c0_4] : memref<44x256xf32, #tpu.memory_space<vmem>>, vector<4x256xf32>
    tpu.vector_store %arg9[%c4, %c0_4], %4 {strides = array<i32>} : memref<44x256xf32, #tpu.memory_space<vmem>>, vector<4x256xf32>,
    %6 = vector.extract_strided_slice %1 {offsets = [0, 2], sizes = [4, 256], strides = [1, 1]} : vector<4x266xf32> to vector<4x256xf32>
    %c8 = arith.constant 8 : index
    %c0_5 = arith.constant 0 : index
    %7 = vector.load %arg9[%c8, %c0_5] : memref<44x256xf32, #tpu.memory_space<vmem>>, vector<4x256xf32>
    tpu.vector_store %arg9[%c8, %c0_5], %6 {strides = array<i32>} : memref<44x256xf32, #tpu.memory_space<vmem>>, vector<4x256xf32>,
    %8 = vector.extract_strided_slice %1 {offsets = [0, 3], sizes = [4, 256], strides = [1, 1]} : vector<4x266xf32> to vector<4x256xf32>
    %c12 = arith.constant 12 : index
    %c0_6 = arith.constant 0 : index
    %9 = vector.load %arg9[%c12, %c0_6] : memref<44x256xf32, #tpu.memory_space<vmem>>, vector<4x256xf32>
    tpu.vector_store %arg9[%c12, %c0_6], %8 {strides = array<i32>} : memref<44x256xf32, #tpu.memory_space<vmem>>, vector<4x256xf32>,
    %10 = vector.extract_strided_slice %1 {offsets = [0, 4], sizes = [4, 256], strides = [1, 1]} : vector<4x266xf32> to vector<4x256xf32>
    %c16 = arith.constant 16 : index
    %c0_7 = arith.constant 0 : index
    %11 = vector.load %arg9[%c16, %c0_7] : memref<44x256xf32, #tpu.memory_space<vmem>>, vector<4x256xf32>
    tpu.vector_store %arg9[%c16, %c0_7], %10 {strides = array<i32>} : memref<44x256xf32, #tpu.memory_space<vmem>>, vector<4x256xf32>,
    %12 = vector.extract_strided_slice %1 {offsets = [0, 5], sizes = [4, 256], strides = [1, 1]} : vector<4x266xf32> to vector<4x256xf32>
    %c20 = arith.constant 20 : index
    %c0_8 = arith.constant 0 : index
    %13 = vector.load %arg9[%c20, %c0_8] : memref<44x256xf32, #tpu.memory_space<vmem>>, vector<4x256xf32>
    tpu.vector_store %arg9[%c20, %c0_8], %12 {strides = array<i32>} : memref<44x256xf32, #tpu.memory_space<vmem>>, vector<4x256xf32>,
    %14 = vector.extract_strided_slice %1 {offsets = [0, 6], sizes = [4, 256], strides = [1, 1]} : vector<4x266xf32> to vector<4x256xf32>
    %c24 = arith.constant 24 : index
    %c0_9 = arith.constant 0 : index
    %15 = vector.load %arg9[%c24, %c0_9] : memref<44x256xf32, #tpu.memory_space<vmem>>, vector<4x256xf32>
    tpu.vector_store %arg9[%c24, %c0_9], %14 {strides = array<i32>} : memref<44x256xf32, #tpu.memory_space<vmem>>, vector<4x256xf32>,
    %16 = vector.extract_strided_slice %1 {offsets = [0, 7], sizes = [4, 256], strides = [1, 1]} : vector<4x266xf32> to vector<4x256xf32>
    %c28 = arith.constant 28 : index
    %c0_10 = arith.constant 0 : index
    %17 = vector.load %arg9[%c28, %c0_10] : memref<44x256xf32, #tpu.memory_space<vmem>>, vector<4x256xf32>
    tpu.vector_store %arg9[%c28, %c0_10], %16 {strides = array<i32>} : memref<44x256xf32, #tpu.memory_space<vmem>>, vector<4x256xf32>,
    %18 = vector.extract_strided_slice %1 {offsets = [0, 8], sizes = [4, 256], strides = [1, 1]} : vector<4x266xf32> to vector<4x256xf32>
    %c32 = arith.constant 32 : index
    %c0_11 = arith.constant 0 : index
    %19 = vector.load %arg9[%c32, %c0_11] : memref<44x256xf32, #tpu.memory_space<vmem>>, vector<4x256xf32>
    tpu.vector_store %arg9[%c32, %c0_11], %18 {strides = array<i32>} : memref<44x256xf32, #tpu.memory_space<vmem>>, vector<4x256xf32>,
    %20 = vector.extract_strided_slice %1 {offsets = [0, 9], sizes = [4, 256], strides = [1, 1]} : vector<4x266xf32> to vector<4x256xf32>
    %c36 = arith.constant 36 : index
    %c0_12 = arith.constant 0 : index
    %21 = vector.load %arg9[%c36, %c0_12] : memref<44x256xf32, #tpu.memory_space<vmem>>, vector<4x256xf32>
    tpu.vector_store %arg9[%c36, %c0_12], %20 {strides = array<i32>} : memref<44x256xf32, #tpu.memory_space<vmem>>, vector<4x256xf32>,
    %22 = vector.extract_strided_slice %1 {offsets = [0, 10], sizes = [4, 256], strides = [1, 1]} : vector<4x266xf32> to vector<4x256xf32>
    %c40 = arith.constant 40 : index
    %c0_13 = arith.constant 0 : index
    %23 = vector.load %arg9[%c40, %c0_13] : memref<44x256xf32, #tpu.memory_space<vmem>>, vector<4x256xf32>
    tpu.vector_store %arg9[%c40, %c0_13], %22 {strides = array<i32>} : memref<44x256xf32, #tpu.memory_space<vmem>>, vector<4x256xf32>,
    %c0_14 = arith.constant 0 : index
    %c0_15 = arith.constant 0 : index
    %24 = vector.load %arg2[%c0_14, %c0_15] : memref<8x44xf32, #tpu.memory_space<vmem>>, vector<8x44xf32>
    %c0_16 = arith.constant 0 : index
    %c0_17 = arith.constant 0 : index
    %25 = vector.load %arg9[%c0_16, %c0_17] : memref<44x256xf32, #tpu.memory_space<vmem>>, vector<44x256xf32>
    %cst = arith.constant dense<0.000000e+00> : vector<8x256xf32>
    %26 = tpu.matmul %24, %25, %cst {dimension_numbers = #tpu.dot_dimension_numbers<[1], [0], [0], [1], [0, 0, 1, 1], [], []>} : vector<8x44xf32>, vector<44x256xf32>, vector<8x256xf32> -> vector<8x256xf32>
    %c0_18 = arith.constant 0 : index
    %c0_19 = arith.constant 0 : index
    %27 = vector.load %arg3[%c0_18, %c0_19] : memref<8x1xf32, #tpu.memory_space<vmem>>, vector<8x1xf32>
    %28 = vector.broadcast %27 : vector<8x1xf32> to vector<8x256xf32>
    %29 = arith.mulf %26, %28 : vector<8x256xf32>
    %c0_20 = arith.constant 0 : index
    %c0_21 = arith.constant 0 : index
    %30 = vector.load %arg4[%c0_20, %c0_21] : memref<8x1xf32, #tpu.memory_space<vmem>>, vector<8x1xf32>
    %31 = vector.broadcast %30 : vector<8x1xf32> to vector<8x256xf32>
    %32 = arith.addf %29, %31 : vector<8x256xf32>
    %cst_22 = arith.constant 0.000000e+00 : f32
    %33 = vector.broadcast %cst_22 : f32 to vector<8x256xf32>
    %34 = arith.cmpf oge, %32, %33 : vector<8x256xf32>
    %cst_23 = arith.constant 0.00999999977 : f32
    %35 = vector.broadcast %cst_23 : f32 to vector<8x256xf32>
    %36 = arith.mulf %35, %32 : vector<8x256xf32>
    %37 = arith.select %34, %32, %36 : vector<8x256xi1>, vector<8x256xf32>
    %38 = tpu.iota {dimensions = array<i32: 1>} : vector<8x256xi32>
    %c200_i32 = arith.constant 200 : i32
    %39 = vector.broadcast %c200_i32 : i32 to vector<8x256xi32>
    %40 = arith.cmpi slt, %38, %39 : vector<8x256xi32>
    %cst_24 = arith.constant 0.000000e+00 : f32
    %41 = vector.broadcast %cst_24 : f32 to vector<8x256xf32>
    %42 = arith.select %40, %37, %41 : vector<8x256xi1>, vector<8x256xf32>
    %cst_25 = arith.constant 0.000000e+00 : f32
    %43 = vector.broadcast %cst_25 : f32 to vector<8x262xf32>
    %c0_26 = arith.constant 0 : index
    %c0_27 = arith.constant 0 : index
    %44 = vector.load %arg10[%c0_26, %c0_27] : memref<8x262xf32, #tpu.memory_space<vmem>>, vector<8x262xf32>
    tpu.vector_store %arg10[%c0_26, %c0_27], %43 {strides = array<i32>} : memref<8x262xf32, #tpu.memory_space<vmem>>, vector<8x262xf32>,
    %c0_28 = arith.constant 0 : index
    %c3 = arith.constant 3 : index
    %45 = vector.load %arg10[%c0_28, %c3] : memref<8x262xf32, #tpu.memory_space<vmem>>, vector<8x256xf32>
    tpu.vector_store %arg10[%c0_28, %c3], %42 {strides = array<i32>} : memref<8x262xf32, #tpu.memory_space<vmem>>, vector<8x256xf32>,
    %c0_29 = arith.constant 0 : index
    %c0_30 = arith.constant 0 : index
    %46 = vector.load %arg10[%c0_29, %c0_30] : memref<8x262xf32, #tpu.memory_space<vmem>>, vector<8x256xf32>
    %c0_31 = arith.constant 0 : index
    %c0_32 = arith.constant 0 : index
    %47 = vector.load %arg11[%c0_31, %c0_32] : memref<56x256xf32, #tpu.memory_space<vmem>>, vector<8x256xf32>
    tpu.vector_store %arg11[%c0_31, %c0_32], %46 {strides = array<i32>} : memref<56x256xf32, #tpu.memory_space<vmem>>, vector<8x256xf32>,
    %c0_33 = arith.constant 0 : index
    %c1 = arith.constant 1 : index
    %48 = vector.load %arg10[%c0_33, %c1] : memref<8x262xf32, #tpu.memory_space<vmem>>, vector<8x256xf32>
    %c8_34 = arith.constant 8 : index
    %c0_35 = arith.constant 0 : index
    %49 = vector.load %arg11[%c8_34, %c0_35] : memref<56x256xf32, #tpu.memory_space<vmem>>, vector<8x256xf32>
    tpu.vector_store %arg11[%c8_34, %c0_35], %48 {strides = array<i32>} : memref<56x256xf32, #tpu.memory_space<vmem>>, vector<8x256xf32>,
    %c0_36 = arith.constant 0 : index
    %c2 = arith.constant 2 : index
    %50 = vector.load %arg10[%c0_36, %c2] : memref<8x262xf32, #tpu.memory_space<vmem>>, vector<8x256xf32>
    %c16_37 = arith.constant 16 : index
    %c0_38 = arith.constant 0 : index
    %51 = vector.load %arg11[%c16_37, %c0_38] : memref<56x256xf32, #tpu.memory_space<vmem>>, vector<8x256xf32>
    tpu.vector_store %arg11[%c16_37, %c0_38], %50 {strides = array<i32>} : memref<56x256xf32, #tpu.memory_space<vmem>>, vector<8x256xf32>,
    %c0_39 = arith.constant 0 : index
    %c3_40 = arith.constant 3 : index
    %52 = vector.load %arg10[%c0_39, %c3_40] : memref<8x262xf32, #tpu.memory_space<vmem>>, vector<8x256xf32>
    %c24_41 = arith.constant 24 : index
    %c0_42 = arith.constant 0 : index
    %53 = vector.load %arg11[%c24_41, %c0_42] : memref<56x256xf32, #tpu.memory_space<vmem>>, vector<8x256xf32>
    tpu.vector_store %arg11[%c24_41, %c0_42], %52 {strides = array<i32>} : memref<56x256xf32, #tpu.memory_space<vmem>>, vector<8x256xf32>,
    %c0_43 = arith.constant 0 : index
    %c4_44 = arith.constant 4 : index
    %54 = vector.load %arg10[%c0_43, %c4_44] : memref<8x262xf32, #tpu.memory_space<vmem>>, vector<8x256xf32>
    %c32_45 = arith.constant 32 : index
    %c0_46 = arith.constant 0 : index
    %55 = vector.load %arg11[%c32_45, %c0_46] : memref<56x256xf32, #tpu.memory_space<vmem>>, vector<8x256xf32>
    tpu.vector_store %arg11[%c32_45, %c0_46], %54 {strides = array<i32>} : memref<56x256xf32, #tpu.memory_space<vmem>>, vector<8x256xf32>,
    %c0_47 = arith.constant 0 : index
    %c5 = arith.constant 5 : index
    %56 = vector.load %arg10[%c0_47, %c5] : memref<8x262xf32, #tpu.memory_space<vmem>>, vector<8x256xf32>
    %c40_48 = arith.constant 40 : index
    %c0_49 = arith.constant 0 : index
    %57 = vector.load %arg11[%c40_48, %c0_49] : memref<56x256xf32, #tpu.memory_space<vmem>>, vector<8x256xf32>
    tpu.vector_store %arg11[%c40_48, %c0_49], %56 {strides = array<i32>} : memref<56x256xf32, #tpu.memory_space<vmem>>, vector<8x256xf32>,
    %c0_50 = arith.constant 0 : index
    %c6 = arith.constant 6 : index
    %58 = vector.load %arg10[%c0_50, %c6] : memref<8x262xf32, #tpu.memory_space<vmem>>, vector<8x256xf32>
    %c48 = arith.constant 48 : index
    %c0_51 = arith.constant 0 : index
    %59 = vector.load %arg11[%c48, %c0_51] : memref<56x256xf32, #tpu.memory_space<vmem>>, vector<8x256xf32>
    tpu.vector_store %arg11[%c48, %c0_51], %58 {strides = array<i32>} : memref<56x256xf32, #tpu.memory_space<vmem>>, vector<8x256xf32>,
    %c0_52 = arith.constant 0 : index
    %c0_53 = arith.constant 0 : index
    %60 = vector.load %arg5[%c0_52, %c0_53] : memref<8x56xf32, #tpu.memory_space<vmem>>, vector<8x56xf32>
    %c0_54 = arith.constant 0 : index
    %c0_55 = arith.constant 0 : index
    %61 = vector.load %arg11[%c0_54, %c0_55] : memref<56x256xf32, #tpu.memory_space<vmem>>, vector<56x256xf32>
    %cst_56 = arith.constant dense<0.000000e+00> : vector<8x256xf32>
    %62 = tpu.matmul %60, %61, %cst_56 {dimension_numbers = #tpu.dot_dimension_numbers<[1], [0], [0], [1], [0, 0, 1, 1], [], []>} : vector<8x56xf32>, vector<56x256xf32>, vector<8x256xf32> -> vector<8x256xf32>
    %c0_57 = arith.constant 0 : index
    %c0_58 = arith.constant 0 : index
    %63 = vector.load %arg6[%c0_57, %c0_58] : memref<8x1xf32, #tpu.memory_space<vmem>>, vector<8x1xf32>
    %64 = vector.broadcast %63 : vector<8x1xf32> to vector<8x256xf32>
    %65 = arith.mulf %62, %64 : vector<8x256xf32>
    %c0_59 = arith.constant 0 : index
    %c0_60 = arith.constant 0 : index
    %66 = vector.load %arg7[%c0_59, %c0_60] : memref<8x1xf32, #tpu.memory_space<vmem>>, vector<8x1xf32>
    %67 = vector.broadcast %66 : vector<8x1xf32> to vector<8x256xf32>
    %68 = arith.addf %65, %67 : vector<8x256xf32>
    %cst_61 = arith.constant 0.000000e+00 : f32
    %69 = vector.broadcast %cst_61 : f32 to vector<8x256xf32>
    %70 = arith.cmpf oge, %68, %69 : vector<8x256xf32>
    %cst_62 = arith.constant 0.00999999977 : f32
    %71 = vector.broadcast %cst_62 : f32 to vector<8x256xf32>
    %72 = arith.mulf %71, %68 : vector<8x256xf32>
    %73 = arith.select %70, %68, %72 : vector<8x256xi1>, vector<8x256xf32>
    %c0_63 = arith.constant 0 : index
    %c0_64 = arith.constant 0 : index
    %c0_65 = arith.constant 0 : index
    %74 = vector.load %arg8[%c0_63, %c0_64, %c0_65] : memref<1x8x256xf32, #tpu.memory_space<vmem>>, vector<1x8x256xf32>
    %75 = vector.shape_cast %74 : vector<1x8x256xf32> to vector<8x256xf32>
    %76 = vector.shape_cast %73 : vector<8x256xf32> to vector<1x8x256xf32>
    tpu.vector_store %arg8[%c0_63, %c0_64, %c0_65], %76 {strides = array<i32>} : memref<1x8x256xf32, #tpu.memory_space<vmem>>, vector<1x8x256xf32>,
    return
  }
  func.func @transform_0(%arg0: i32) -> (i32, i32, i32) {
    %c0_i32 = arith.constant 0 : i32
    %c0_i32_0 = arith.constant 0 : i32
    %c0_i32_1 = arith.constant 0 : i32
    return %arg0, %c0_i32, %c0_i32_0 : i32, i32, i32
  }
  func.func @transform_1(%arg0: i32) -> (i32, i32) {
    %c0_i32 = arith.constant 0 : i32
    %c0_i32_0 = arith.constant 0 : i32
    %c0_i32_1 = arith.constant 0 : i32
    return %c0_i32, %c0_i32_0 : i32, i32
  }
  func.func @transform_2(%arg0: i32) -> (i32, i32) {
    %c0_i32 = arith.constant 0 : i32
    %c0_i32_0 = arith.constant 0 : i32
    %c0_i32_1 = arith.constant 0 : i32
    return %c0_i32, %c0_i32_0 : i32, i32
  }
  func.func @transform_3(%arg0: i32) -> (i32, i32) {
    %c0_i32 = arith.constant 0 : i32
    %c0_i32_0 = arith.constant 0 : i32
    %c0_i32_1 = arith.constant 0 : i32
    return %c0_i32, %c0_i32_0 : i32, i32
  }
  func.func @transform_4(%arg0: i32) -> (i32, i32) {
    %c0_i32 = arith.constant 0 : i32
    %c0_i32_0 = arith.constant 0 : i32
    %c0_i32_1 = arith.constant 0 : i32
    return %c0_i32, %c0_i32_0 : i32, i32
  }
  func.func @transform_5(%arg0: i32) -> (i32, i32) {
    %c0_i32 = arith.constant 0 : i32
    %c0_i32_0 = arith.constant 0 : i32
    %c0_i32_1 = arith.constant 0 : i32
    return %c0_i32, %c0_i32_0 : i32, i32
  }
  func.func @transform_6(%arg0: i32) -> (i32, i32) {
    %c0_i32 = arith.constant 0 : i32
    %c0_i32_0 = arith.constant 0 : i32
    %c0_i32_1 = arith.constant 0 : i32
    return %c0_i32, %c0_i32_0 : i32, i32
  }
  func.func @transform_7(%arg0: i32) -> (i32, i32, i32) {
    %c0_i32 = arith.constant 0 : i32
    %c0_i32_0 = arith.constant 0 : i32
    %c0_i32_1 = arith.constant 0 : i32
    return %arg0, %c0_i32, %c0_i32_0 : i32, i32, i32
  }
}

</mosaic_0001>

<llo_original>
// kernel: double_conv.1
$region0: #{double_conv.1}
  #allocation0 [shape = 'u32[]', space=smem, size = 0x4, offset = 0x4, fixed_abs, tag = 'smem constant byte address 0x4 - core index']
  #allocation1 [shape = 'u32[144,128]{1,0:T(1,128)}', space=vmem, size = 0x12000, scoped, tag = 'internal scratch']
  #allocation2 [shape = 'f32[44,256]{1,0:T(8,128)}', space=vmem, size = 0xc000, scoped, tag = 'scratch operand']
  #allocation3 [shape = 'f32[8,262]{1,0:T(8,128)}', space=vmem, size = 0x3000, scoped, tag = 'scratch operand']
  #allocation4 [shape = 'f32[56,256]{1,0:T(8,128)}', space=vmem, size = 0xe000, scoped, tag = 'scratch operand']
  %s0 = inlined_call_operand.vmem [shape: f32[2,4,266], index: 0, kind: input, shape index: {}]
  %s1 = inlined_call_operand.vmem [shape: f32[8,44], index: 1, kind: input, shape index: {}]
  %s2 = inlined_call_operand.vmem [shape: f32[8,1], index: 2, kind: input, shape index: {}]
  %s3 = inlined_call_operand.vmem [shape: f32[8,1], index: 3, kind: input, shape index: {}]
  %s4 = inlined_call_operand.vmem [shape: f32[8,56], index: 4, kind: input, shape index: {}]
  %s5 = inlined_call_operand.vmem [shape: f32[8,1], index: 5, kind: input, shape index: {}]
  %s6 = inlined_call_operand.vmem [shape: f32[8,1], index: 6, kind: input, shape index: {}]
  %s7 = inlined_call_operand.hbm [shape: f32[2,8,256], index: 7, kind: output, shape index: {}]
  %s8 = sld [smem:[#allocation0]]
  $region61: #{double_conv.1} parent=0
    _
  %s10 = ssub.s32 1, %s8
  %s11 = scalar_select 0, %s10, %s8
  $region1: #{double_conv.1} parent=0
    #allocation5 [shape = 'u8[16384]{0}', space=vmem, size = 0x4000, scoped, tag = 'output window, operand 0']
    #allocation6 [shape = 's32[2]{0}', space=sflag, size = 0x8, scoped, tag = 'scoped memory for double_conv.1']
    %12 = vsyncpa [#allocation6], 0
    %s13 = scalar_lea.sflag [#allocation6], 1
    %14 = vsyncpa %s13, 0
    loop: start=0, step=1, limit=4
    $region2: #{double_conv.1} parent=1 // loop_pre_header
      _
    $region3: #{double_conv.1} parent=1 // loop_header
      %s16 = sphi 0, %s20
      %p17 = scmp.ge.s32.totalorder %s16, 4
      %s26 = sphi 0, %s28
      %s29 = sphi 0, %s26
      %s30 = sphi 0, %s29
      %s46 = sphi 0, %s30
      %s50 = sphi 0, %s50
      %s52 = sphi 0, %s50
      %s53 = sphi 0, %s52
      %s67 = sphi 0, %s53
      %s71 = sphi 0, %s71
      %s73 = sphi 0, %s71
      %s74 = sphi 0, %s73
      %s88 = sphi 0, %s74
      %s92 = sphi 0, %s92
      %s94 = sphi 0, %s92
      %s95 = sphi 0, %s94
      %s109 = sphi 0, %s95
      %s113 = sphi 0, %s113
      %s115 = sphi 0, %s113
      %s116 = sphi 0, %s115
      %s130 = sphi 0, %s116
      %s134 = sphi 0, %s134
      %s136 = sphi 0, %s134
      %s137 = sphi 0, %s136
      %s151 = sphi 0, %s137
      %s155 = sphi 0, %s155
      %s157 = sphi 0, %s155
      %s158 = sphi 0, %s157
      %s172 = sphi 0, %s158
      %s178 = sphi 0, %s180
      %s181 = sphi 0, %s178
      %s182 = sphi 0, %s181
      %s198 = sphi 0, %s182
    $region4: #{double_conv.1} parent=1 // loop_header_branch
      %19 = sbr.rel (%p17) target = $region8
    $region5: #{double_conv.1} parent=1 // loop_body
      %s21 = ssub.s32 %s16, 1
      %s22 = ssub.s32 %s16, 2
      %s23 = sadd.s32 %s16, 1
      %s24 = ssub.s32 %s16, %s23
      %p25 = scmp.eq.s32.totalorder %s24, 0
      %s27 = sadd.s32 %s26, 1
      %s28 = scalar_select %p25, %s26, %s27
      %p31 = pneg %p25
      %p32 = scmp.eq.s32.totalorder %s16, 1
      %p33 = por %p31, %p32
      %p34 = scmp.ne.s32.totalorder %s26, %s29
      %p35 = scmp.eq.s32.totalorder %s16, 0
      %p36 = por %p34, %p35
      %p37 = scmp.ne.s32.totalorder %s26, %s29
      %p38 = scmp.eq.s32.totalorder %s21, 1
      %p39 = por %p37, %p38
      %p40 = scmp.ne.s32.totalorder %s29, %s30
      %p41 = scmp.eq.s32.totalorder %s21, 0
      %p42 = por %p40, %p41
      %p43 = scmp.ne.s32.totalorder %s29, %s30
      %p44 = scmp.eq.s32.totalorder %s22, 1
      %p45 = por %p43, %p44
      %p47 = scmp.ne.s32.totalorder %s30, %s46
      %p48 = scmp.eq.s32.totalorder %s22, 0
      %p49 = por %p47, %p48
      %s51 = sadd.s32 %s50, 1
      %p54 = scmp.eq.s32.totalorder %s16, 1
      %p55 = scmp.ne.s32.totalorder %s50, %s52
      %p56 = scmp.eq.s32.totalorder %s16, 0
      %p57 = por %p55, %p56
      %p58 = scmp.ne.s32.totalorder %s50, %s52
      %p59 = scmp.eq.s32.totalorder %s21, 1
      %p60 = por %p58, %p59
      %p61 = scmp.ne.s32.totalorder %s52, %s53
      %p62 = scmp.eq.s32.totalorder %s21, 0
      %p63 = por %p61, %p62
      %p64 = scmp.ne.s32.totalorder %s52, %s53
      %p65 = scmp.eq.s32.totalorder %s22, 1
      %p66 = por %p64, %p65
      %p68 = scmp.ne.s32.totalorder %s53, %s67
      %p69 = scmp.eq.s32.totalorder %s22, 0
      %p70 = por %p68, %p69
      %s72 = sadd.s32 %s71, 1
      %p75 = scmp.eq.s32.totalorder %s16, 1
      %p76 = scmp.ne.s32.totalorder %s71, %s73
      %p77 = scmp.eq.s32.totalorder %s16, 0
      %p78 = por %p76, %p77
      %p79 = scmp.ne.s32.totalorder %s71, %s73
      %p80 = scmp.eq.s32.totalorder %s21, 1
      %p81 = por %p79, %p80
      %p82 = scmp.ne.s32.totalorder %s73, %s74
      %p83 = scmp.eq.s32.totalorder %s21, 0
      %p84 = por %p82, %p83
      %p85 = scmp.ne.s32.totalorder %s73, %s74
      %p86 = scmp.eq.s32.totalorder %s22, 1
      %p87 = por %p85, %p86
      %p89 = scmp.ne.s32.totalorder %s74, %s88
      %p90 = scmp.eq.s32.totalorder %s22, 0
      %p91 = por %p89, %p90
      %s93 = sadd.s32 %s92, 1
      %p96 = scmp.eq.s32.totalorder %s16, 1
      %p97 = scmp.ne.s32.totalorder %s92, %s94
      %p98 = scmp.eq.s32.totalorder %s16, 0
      %p99 = por %p97, %p98
      %p100 = scmp.ne.s32.totalorder %s92, %s94
      %p101 = scmp.eq.s32.totalorder %s21, 1
      %p102 = por %p100, %p101
      %p103 = scmp.ne.s32.totalorder %s94, %s95
      %p104 = scmp.eq.s32.totalorder %s21, 0
      %p105 = por %p103, %p104
      %p106 = scmp.ne.s32.totalorder %s94, %s95
      %p107 = scmp.eq.s32.totalorder %s22, 1
      %p108 = por %p106, %p107
      %p110 = scmp.ne.s32.totalorder %s95, %s109
      %p111 = scmp.eq.s32.totalorder %s22, 0
      %p112 = por %p110, %p111
      %s114 = sadd.s32 %s113, 1
      %p117 = scmp.eq.s32.totalorder %s16, 1
      %p118 = scmp.ne.s32.totalorder %s113, %s115
      %p119 = scmp.eq.s32.totalorder %s16, 0
      %p120 = por %p118, %p119
      %p121 = scmp.ne.s32.totalorder %s113, %s115
      %p122 = scmp.eq.s32.totalorder %s21, 1
      %p123 = por %p121, %p122
      %p124 = scmp.ne.s32.totalorder %s115, %s116
      %p125 = scmp.eq.s32.totalorder %s21, 0
      %p126 = por %p124, %p125
      %p127 = scmp.ne.s32.totalorder %s115, %s116
      %p128 = scmp.eq.s32.totalorder %s22, 1
      %p129 = por %p127, %p128
      %p131 = scmp.ne.s32.totalorder %s116, %s130
      %p132 = scmp.eq.s32.totalorder %s22, 0
      %p133 = por %p131, %p132
      %s135 = sadd.s32 %s134, 1
      %p138 = scmp.eq.s32.totalorder %s16, 1
      %p139 = scmp.ne.s32.totalorder %s134, %s136
      %p140 = scmp.eq.s32.totalorder %s16, 0
      %p141 = por %p139, %p140
      %p142 = scmp.ne.s32.totalorder %s134, %s136
      %p143 = scmp.eq.s32.totalorder %s21, 1
      %p144 = por %p142, %p143
      %p145 = scmp.ne.s32.totalorder %s136, %s137
      %p146 = scmp.eq.s32.totalorder %s21, 0
      %p147 = por %p145, %p146
      %p148 = scmp.ne.s32.totalorder %s136, %s137
      %p149 = scmp.eq.s32.totalorder %s22, 1
      %p150 = por %p148, %p149
      %p152 = scmp.ne.s32.totalorder %s137, %s151
      %p153 = scmp.eq.s32.totalorder %s22, 0
      %p154 = por %p152, %p153
      %s156 = sadd.s32 %s155, 1
      %p159 = scmp.eq.s32.totalorder %s16, 1
      %p160 = scmp.ne.s32.totalorder %s155, %s157
      %p161 = scmp.eq.s32.totalorder %s16, 0
      %p162 = por %p160, %p161
      %p163 = scmp.ne.s32.totalorder %s155, %s157
      %p164 = scmp.eq.s32.totalorder %s21, 1
      %p165 = por %p163, %p164
      %p166 = scmp.ne.s32.totalorder %s157, %s158
      %p167 = scmp.eq.s32.totalorder %s21, 0
      %p168 = por %p166, %p167
      %p169 = scmp.ne.s32.totalorder %s157, %s158
      %p170 = scmp.eq.s32.totalorder %s22, 1
      %p171 = por %p169, %p170
      %p173 = scmp.ne.s32.totalorder %s158, %s172
      %p174 = scmp.eq.s32.totalorder %s22, 0
      %p175 = por %p173, %p174
      %s176 = ssub.s32 %s16, %s23
      %p177 = scmp.eq.s32.totalorder %s176, 0
      %s179 = sadd.s32 %s178, 1
      %s180 = scalar_select %p177, %s178, %s179
      %p183 = pneg %p177
      %p184 = scmp.eq.s32.totalorder %s16, 1
      %p185 = por %p183, %p184
      %p186 = scmp.ne.s32.totalorder %s178, %s181
      %p187 = scmp.eq.s32.totalorder %s16, 0
      %p188 = por %p186, %p187
      %p189 = scmp.ne.s32.totalorder %s178, %s181
      %p190 = scmp.eq.s32.totalorder %s21, 1
      %p191 = por %p189, %p190
      %p192 = scmp.ne.s32.totalorder %s181, %s182
      %p193 = scmp.eq.s32.totalorder %s21, 0
      %p194 = por %p192, %p193
      %p195 = scmp.ne.s32.totalorder %s181, %s182
      %p196 = scmp.eq.s32.totalorder %s22, 1
      %p197 = por %p195, %p196
      %p199 = scmp.ne.s32.totalorder %s182, %s198
      %p200 = scmp.eq.s32.totalorder %s22, 0
      %p201 = por %p199, %p200
      %p202 = scmp.le.s32.totalorder 1, %s16
      %p203 = scmp.lt.s32.totalorder %s16, 3
      %p204 = pnand %p202, %p203
      %p205 = pneg %p204
      // Predicated region
      $region9: #{double_conv.1} parent=5 // pred_check
        _
      $region10: #{double_conv.1} parent=5 // pred_check_branch
        %207 = sbr.rel (%p204) target = $region12
      $region11: #{double_conv.1} parent=5 // pred_region
        %s208 = ssub.s32 %s16, 1
        // Predicated region
        $region13: #{double_conv.1} parent=11 // pred_check
          %p209 = pneg %p63
        $region14: #{double_conv.1} parent=11 // pred_check_branch
          %211 = sbr.rel (%p209) target = $region16
        $region15: #{double_conv.1} parent=11 // pred_region
          _
        $region16: #{double_conv.1} parent=11 // pred_fallthru
          _
        // Predicated region
        $region17: #{double_conv.1} parent=11 // pred_check
          %p212 = pneg %p84
        $region18: #{double_conv.1} parent=11 // pred_check_branch
          %214 = sbr.rel (%p212) target = $region20
        $region19: #{double_conv.1} parent=11 // pred_region
          _
        $region20: #{double_conv.1} parent=11 // pred_fallthru
          _
        // Predicated region
        $region21: #{double_conv.1} parent=11 // pred_check
          %p215 = pneg %p105
        $region22: #{double_conv.1} parent=11 // pred_check_branch
          %217 = sbr.rel (%p215) target = $region24
        $region23: #{double_conv.1} parent=11 // pred_region
          _
        $region24: #{double_conv.1} parent=11 // pred_fallthru
          _
        // Predicated region
        $region25: #{double_conv.1} parent=11 // pred_check
          %p218 = pneg %p126
        $region26: #{double_conv.1} parent=11 // pred_check_branch
          %220 = sbr.rel (%p218) target = $region28
        $region27: #{double_conv.1} parent=11 // pred_region
          _
        $region28: #{double_conv.1} parent=11 // pred_fallthru
          _
        // Predicated region
        $region29: #{double_conv.1} parent=11 // pred_check
          %p221 = pneg %p147
        $region30: #{double_conv.1} parent=11 // pred_check_branch
          %223 = sbr.rel (%p221) target = $region32
        $region31: #{double_conv.1} parent=11 // pred_region
          _
        $region32: #{double_conv.1} parent=11 // pred_fallthru
          _
        // Predicated region
        $region33: #{double_conv.1} parent=11 // pred_check
          %p224 = pneg %p168
        $region34: #{double_conv.1} parent=11 // pred_check_branch
          %226 = sbr.rel (%p224) target = $region36
        $region35: #{double_conv.1} parent=11 // pred_region
          _
        $region36: #{double_conv.1} parent=11 // pred_fallthru
          _
      $region12: #{double_conv.1} parent=5 // pred_fallthru
        _
      %p227 = scmp.lt.s32.totalorder %s16, 2
      // Predicated region
      $region37: #{double_conv.1} parent=5 // pred_check
        %p228 = pneg %p227
      $region38: #{double_conv.1} parent=5 // pred_check_branch
        %230 = sbr.rel (%p228) target = $region40
      $region39: #{double_conv.1} parent=5 // pred_region
        // Predicated region
        $region41: #{double_conv.1} parent=39 // pred_check
          %p231 = pneg %p36
        $region42: #{double_conv.1} parent=39 // pred_check_branch
          %233 = sbr.rel (%p231) target = $region44
        $region43: #{double_conv.1} parent=39 // pred_region
          %p234 = scmp.lt.s32.totalorder %s16, 1
          %s235 = scalar_select %p234, %s16, 1
          %s236 = smul.addr %s235, 3
          %s237 = smul.addr %s236, 4
          %s238 = scalar_lea.vmem %s0, %s237
        $region44: #{double_conv.1} parent=39 // pred_fallthru
          _
      $region40: #{double_conv.1} parent=5 // pred_fallthru
        _
      %p239 = scmp.le.s32.totalorder 1, %s16
      %p240 = scmp.lt.s32.totalorder %s16, 3
      %p241 = pnand %p239, %p240
      %p242 = pneg %p241
      // Predicated region
      $region45: #{double_conv.1} parent=5 // pred_check
        _
      $region46: #{double_conv.1} parent=5 // pred_check_branch
        %244 = sbr.rel (%p241) target = $region48
      $region47: #{double_conv.1} parent=5 // pred_region
        %s245 = ssub.s32 %s16, 1
        %p246 = scmp.lt.s32.totalorder %s21, 1
        %s247 = scalar_select %p246, %s21, 1
        %s248 = smul.addr %s247, 3
        %s249 = smul.addr %s248, 4
        %s250 = scalar_lea.vmem %s0, %s249
        %p251 = pneg %p42
        %p252 = pneg %p39
        %p253 = pneg %p63
        %p254 = pneg %p60
        %p255 = pneg %p84
        %p256 = pneg %p81
        %p257 = pneg %p105
        %p258 = pneg %p102
        %p259 = pneg %p126
        %p260 = pneg %p123
        %p261 = pneg %p147
        %p262 = pneg %p144
        %p263 = pneg %p168
        %p264 = pneg %p165
        %p265 = pneg %p194
        %p266 = pneg %p191
        %s267 = sand.u32 %s181, 1
        %s268 = scalar_lea.sflag [#allocation6], %s267
        %s269 = sand.u32 %s181, 1
        %s270 = smul.addr %s269, 16
        %s271 = scalar_lea.vmem [#allocation5], %s270
        %p272 = scmp.lt.s32.totalorder %s21, 1
        %s273 = scalar_select %p272, %s21, 1
        %s274 = smul.addr %s273, 3
        %s275 = smul.addr %s274, 4
        %s276 = scalar_lea.vmem %s0, %s275
        %v277 = vld [vmem:[%s276] sm:$0xff]
        %v278 = vld [vmem:[%s276 + $0x8] sm:$0xf]
        %v280 = vcombine.high %v277, %v277
        %282 = vst [vmem:[#allocation2] sm:$0xf] %v277
        %283 = vst [vmem:[#allocation2 + $0x8] sm:$0xf] %v280
        %v285 = vcombine.low %v277, %v277
        %v286 = vcombine.low %v278, %v278
        %287 = vrot.lane.b32.xlu0 %v285, 127
        %v288 = vpop.permute.xlu0 %287
        %289 = vrot.lane.b32.xlu0 %v277, 127
        %v290 = vpop.permute.xlu0 %289
        %291 = vrot.lane.b32.xlu0 %v286, 127
        %v292 = vpop.permute.xlu0 %291
        %vm293 = vcmask 1039360
        %v294 = vsel %vm293, %v288, %v290
        %v295 = vsel %vm293, %v290, %v292
        %298 = vst [vmem:[#allocation2] sm:$0xf0] %v294
        %299 = vst [vmem:[#allocation2 + $0x8] sm:$0xf0] %v295
        %300 = vrot.lane.b32.xlu0 %v277, 126
        %v301 = vpop.permute.xlu0 %300
        %302 = vrot.lane.b32.xlu0 %v280, 126
        %v303 = vpop.permute.xlu0 %302
        %304 = vrot.lane.b32.xlu0 %v278, 126
        %v305 = vpop.permute.xlu0 %304
        %vm306 = vcmask 1031168
        %v307 = vsel %vm306, %v301, %v303
        %v308 = vsel %vm306, %v303, %v305
        %311 = vst [vmem:[#allocation2 + $0x10] sm:$0xf] %v307
        %312 = vst [vmem:[#allocation2 + $0x18] sm:$0xf] %v308
        %313 = vrot.lane.b32.xlu0 %v285, 125
        %v314 = vpop.permute.xlu0 %313
        %315 = vrot.lane.b32.xlu0 %v277, 125
        %v316 = vpop.permute.xlu0 %315
        %317 = vrot.lane.b32.xlu0 %v286, 125
        %v318 = vpop.permute.xlu0 %317
        %vm319 = vcmask 1022976
        %v320 = vsel %vm319, %v314, %v316
        %v321 = vsel %vm319, %v316, %v318
        %324 = vst [vmem:[#allocation2 + $0x10] sm:$0xf0] %v320
        %325 = vst [vmem:[#allocation2 + $0x18] sm:$0xf0] %v321
        %326 = vrot.lane.b32.xlu0 %v277, 124
        %v327 = vpop.permute.xlu0 %326
        %328 = vrot.lane.b32.xlu0 %v280, 124
        %v329 = vpop.permute.xlu0 %328
        %330 = vrot.lane.b32.xlu0 %v278, 124
        %v331 = vpop.permute.xlu0 %330
        %vm332 = vcmask 1014784
        %v333 = vsel %vm332, %v327, %v329
        %v334 = vsel %vm332, %v329, %v331
        %337 = vst [vmem:[#allocation2 + $0x20] sm:$0xf] %v333
        %338 = vst [vmem:[#allocation2 + $0x28] sm:$0xf] %v334
        %339 = vrot.lane.b32.xlu0 %v285, 123
        %v340 = vpop.permute.xlu0 %339
        %341 = vrot.lane.b32.xlu0 %v277, 123
        %v342 = vpop.permute.xlu0 %341
        %343 = vrot.lane.b32.xlu0 %v286, 123
        %v344 = vpop.permute.xlu0 %343
        %vm345 = vcmask 1006592
        %v346 = vsel %vm345, %v340, %v342
        %v347 = vsel %vm345, %v342, %v344
        %350 = vst [vmem:[#allocation2 + $0x20] sm:$0xf0] %v346
        %351 = vst [vmem:[#allocation2 + $0x28] sm:$0xf0] %v347
        %352 = vrot.lane.b32.xlu0 %v277, 122
        %v353 = vpop.permute.xlu0 %352
        %354 = vrot.lane.b32.xlu0 %v280, 122
        %v355 = vpop.permute.xlu0 %354
        %356 = vrot.lane.b32.xlu0 %v278, 122
        %v357 = vpop.permute.xlu0 %356
        %vm358 = vcmask 998400
        %v359 = vsel %vm358, %v353, %v355
        %v360 = vsel %vm358, %v355, %v357
        %363 = vst [vmem:[#allocation2 + $0x30] sm:$0xf] %v359
        %364 = vst [vmem:[#allocation2 + $0x38] sm:$0xf] %v360
        %365 = vrot.lane.b32.xlu0 %v285, 121
        %v366 = vpop.permute.xlu0 %365
        %367 = vrot.lane.b32.xlu0 %v277, 121
        %v368 = vpop.permute.xlu0 %367
        %369 = vrot.lane.b32.xlu0 %v286, 121
        %v370 = vpop.permute.xlu0 %369
        %vm371 = vcmask 990208
        %v372 = vsel %vm371, %v366, %v368
        %v373 = vsel %vm371, %v368, %v370
        %376 = vst [vmem:[#allocation2 + $0x30] sm:$0xf0] %v372
        %377 = vst [vmem:[#allocation2 + $0x38] sm:$0xf0] %v373
        %378 = vrot.lane.b32.xlu0 %v277, 120
        %v379 = vpop.permute.xlu0 %378
        %380 = vrot.lane.b32.xlu0 %v280, 120
        %v381 = vpop.permute.xlu0 %380
        %382 = vrot.lane.b32.xlu0 %v278, 120
        %v383 = vpop.permute.xlu0 %382
        %vm384 = vcmask 982016
        %v385 = vsel %vm384, %v379, %v381
        %v386 = vsel %vm384, %v381, %v383
        %389 = vst [vmem:[#allocation2 + $0x40] sm:$0xf] %v385
        %390 = vst [vmem:[#allocation2 + $0x48] sm:$0xf] %v386
        %391 = vrot.lane.b32.xlu0 %v285, 119
        %v392 = vpop.permute.xlu0 %391
        %393 = vrot.lane.b32.xlu0 %v277, 119
        %v394 = vpop.permute.xlu0 %393
        %395 = vrot.lane.b32.xlu0 %v286, 119
        %v396 = vpop.permute.xlu0 %395
        %vm397 = vcmask 973824
        %v398 = vsel %vm397, %v392, %v394
        %v399 = vsel %vm397, %v394, %v396
        %402 = vst [vmem:[#allocation2 + $0x40] sm:$0xf0] %v398
        %403 = vst [vmem:[#allocation2 + $0x48] sm:$0xf0] %v399
        %404 = vrot.lane.b32.xlu0 %v277, 118
        %v405 = vpop.permute.xlu0 %404
        %406 = vrot.lane.b32.xlu0 %v280, 118
        %v407 = vpop.permute.xlu0 %406
        %408 = vrot.lane.b32.xlu0 %v278, 118
        %v409 = vpop.permute.xlu0 %408
        %vm410 = vcmask 965632
        %v411 = vsel %vm410, %v405, %v407
        %v412 = vsel %vm410, %v407, %v409
        %415 = vst [vmem:[#allocation2 + $0x50] sm:$0xf] %v411
        %416 = vst [vmem:[#allocation2 + $0x58] sm:$0xf] %v412
        %v417 = vld [vmem:[%s1] sm:$0xff]
        %v418 = vld [vmem:[#allocation2] sm:$0xff]
        %v419 = vld [vmem:[#allocation2 + $0x8] sm:$0xff]
        %v420 = vld [vmem:[#allocation2 + $0x10] sm:$0xff]
        %v421 = vld [vmem:[#allocation2 + $0x18] sm:$0xff]
        %v422 = vld [vmem:[#allocation2 + $0x20] sm:$0xff]
        %v423 = vld [vmem:[#allocation2 + $0x28] sm:$0xff]
        %v424 = vld [vmem:[#allocation2 + $0x30] sm:$0xff]
        %v425 = vld [vmem:[#allocation2 + $0x38] sm:$0xff]
        %v426 = vld [vmem:[#allocation2 + $0x40] sm:$0xff]
        %v427 = vld [vmem:[#allocation2 + $0x48] sm:$0xff]
        %v428 = vld [vmem:[#allocation2 + $0x50] sm:$0xf]
        %v429 = vld [vmem:[#allocation2 + $0x58] sm:$0xf]
        %vm430 = vcmask 359424
        %v432 = vsel %vm430, %v417, 0
        %vm434 = vcmask 1043456
        %v436 = vsel %vm434, %v428, 0
        %v439 = vsel %vm434, %v429, 0
        %441 = vmatprep.subr.mxu0 %v419
        %442 = vmatpush1.msra.mxu0 %v418
        %443 = vmatprep.subr.mxu0 %v421
        %444 = vmatpush1.msra.mxu0 %v420
        %445 = vmatprep.subr.mxu0 %v423
        %446 = vmatpush1.msra.mxu0 %v422
        %447 = vmatprep.subr.mxu0 %v425
        %448 = vmatpush1.msra.mxu0 %v424
        %449 = vmatprep.subr.mxu0 %v427
        %450 = vmatpush1.msra.mxu0 %v426
        %451 = vmatprep.subr.mxu0 %v439
        %452 = vmatpush1.msra.mxu0 %v436
        %453 = vmatprep.subr.mxu0 0.0
        %454 = vmatpush1.msra.mxu0 0.0
        %455 = vmatprep.subr.mxu0 0.0
        %456 = vmatpush1.msra.mxu0 0.0
        %457 = vmatprep.subr.mxu0 0.0
        %458 = vmatpush1.msra.mxu0 0.0
        %459 = vmatprep.subr.mxu0 0.0
        %460 = vmatpush1.msra.mxu0 0.0
        %461 = vmatprep.subr.mxu0 0.0
        %462 = vmatpush1.msra.mxu0 0.0
        %463 = vmatprep.subr.mxu0 0.0
        %464 = vmatpush1.msra.mxu0 0.0
        %465 = vmatprep.subr.mxu0 0.0
        %466 = vmatpush1.msra.mxu0 0.0
        %467 = vmatprep.subr.mxu0 0.0
        %468 = vmatpush1.msra.mxu0 0.0
        %469 = vmatprep.subr.mxu0 0.0
        %470 = vmatpush1.msra.mxu0 0.0
        %471 = vmatprep.subr.mxu0 0.0
        %472 = vmatpush1.msra.mxu0 0.0
        %473 = vmatprep.subr.mxu0 0.0
        %474 = vmatpush1.msra.mxu0 0.0
        %475 = vmatprep.subr.mxu0 0.0
        %476 = vmatpush1.msra.mxu0 0.0
        %477 = vmatprep.subr.mxu0 0.0
        %478 = vmatpush1.msra.mxu0 0.0
        %479 = vmatprep.subr.mxu0 0.0
        %480 = vmatpush1.msra.mxu0 0.0
        %481 = vmatprep.subr.mxu0 0.0
        %482 = vmatpush1.msra.mxu0 0.0
        %483 = vmatprep.subr.mxu0 0.0
        %484 = vmatpush1.msra.mxu0 0.0
        %485 = vmatprep.subr.mxu0 0.0
        %486 = vmatpush1.msra.mxu0 0.0
        %487 = vmatprep.subr.mxu0 0.0
        %488 = vmatpush1.msra.mxu0 0.0
        %489 = vmatprep.subr.mxu0 0.0
        %490 = vmatpush1.msra.mxu0 0.0
        %491 = vmatprep.subr.mxu0 0.0
        %492 = vmatpush1.msra.mxu0 0.0
        %493 = vmatprep.subr.mxu0 0.0
        %494 = vmatpush1.msra.mxu0 0.0
        %495 = vmatprep.subr.mxu0 0.0
        %496 = vmatpush1.msra.mxu0 0.0
        %497 = vmatprep.subr.mxu0 0.0
        %498 = vmatpush1.msra.mxu0 0.0
        %499 = vmatprep.subr.mxu0 0.0
        %500 = vmatpush1.msra.mxu0 0.0
        %501 = vmatprep.subr.mxu0 0.0
        %502 = vmatpush1.msra.mxu0 0.0
        %503 = vmatprep.subr.mxu0 0.0
        %504 = vmatpush1.msra.mxu0 0.0
        %505 = vmatprep.mubr.f32.mxu0 0.0
        %506 = vmatmul.mubr.f32.gmra.mrb[0].mxu0 %v432
        %v507 = vpop.f32.mrb[0].mxu0
        %v508 = vadd.f32 0.0, %v507
        %v509 = vpop.f32.mrb[0].mxu0
        %v510 = vadd.f32 0.0, %v509
        %511 = vdwg.mxu0
        %v512 = vld [vmem:[%s2] sm:$0xff]
        %514 = vset.pattern.permute.xlu0 0
        %515 = vperm.xlu0 %514, %v512
        %v516 = vpop.permute.xlu0 %515
        %v518 = vmul.f32 %v508, %v516
        %v519 = vmul.f32 %v510, %v516
        %v520 = vld [vmem:[%s3] sm:$0xff]
        %522 = vset.pattern.permute.xlu0 0
        %523 = vperm.xlu0 %522, %v520
        %v524 = vpop.permute.xlu0 %523
        %v526 = vadd.f32 %v518, %v524
        %v527 = vadd.f32 %v519, %v524
        %vm528 = vcmp.ge.f32.partialorder %v526, 0.0
        %vm529 = vcmp.ge.f32.partialorder %v527, 0.0
        %v530 = vmul.f32 %v526, 0.01
        %v531 = vmul.f32 %v527, 0.01
        %v532 = vsel %vm528, %v526, %v530
        %v533 = vsel %vm529, %v527, %v531
        %v534 = vlaneseq
        %v535 = vand.u32 %v534, 127
        %v536 = vadd.s32 %v535, 128
        %vm537 = vcmp.lt.s32.totalorder %v535, 200
        %vm538 = vcmp.lt.s32.totalorder %v536, 200
        %v539 = vsel %vm537, %v532, 0.0
        %v540 = vsel %vm538, %v533, 0.0
        %541 = vst [vmem:[#allocation3] sm:$0xff] 0.0
        %542 = vst [vmem:[#allocation3 + $0x8] sm:$0xff] 0.0
        %vm543 = vcmask 48128
        %544 = vst.msk [vmem:[#allocation3 + $0x10] sm:$0xff] %vm543, 0.0
        %547 = vrot.lane.b32.xlu0 %v539, 3
        %v548 = vpop.permute.xlu0 %547
        %549 = vrot.lane.b32.xlu0 %v540, 3
        %v550 = vpop.permute.xlu0 %549
        %vm551 = vcmask 23552
        %v552 = vsel %vm551, %v548, %v550
        %vm556 = vcmask 1047576
        %557 = vst.msk [vmem:[#allocation3] sm:$0xff] %vm556, %v548
        %558 = vst [vmem:[#allocation3 + $0x8] sm:$0xff] %v552
        %559 = vst.msk [vmem:[#allocation3 + $0x10] sm:$0xff] %vm551, %v550
        %v560 = vld [vmem:[#allocation3] sm:$0xff]
        %v561 = vld [vmem:[#allocation3 + $0x8] sm:$0xff]
        %562 = vst [vmem:[#allocation4] sm:$0xff] %v560
        %563 = vst [vmem:[#allocation4 + $0x8] sm:$0xff] %v561
        %v564 = vld [vmem:[#allocation3] sm:$0xff]
        %v565 = vld [vmem:[#allocation3 + $0x8] sm:$0xff]
        %v566 = vld [vmem:[#allocation3 + $0x10] sm:$0xff]
        %570 = vrot.lane.b32.xlu0 %v564, 127
        %v571 = vpop.permute.xlu0 %570
        %572 = vrot.lane.b32.xlu0 %v565, 127
        %v573 = vpop.permute.xlu0 %572
        %574 = vrot.lane.b32.xlu0 %v566, 127
        %v575 = vpop.permute.xlu0 %574
        %v576 = vsel %vm293, %v571, %v573
        %v577 = vsel %vm293, %v573, %v575
        %580 = vst [vmem:[#allocation4 + $0x10] sm:$0xff] %v576
        %581 = vst [vmem:[#allocation4 + $0x18] sm:$0xff] %v577
        %v582 = vld [vmem:[#allocation3] sm:$0xff]
        %v583 = vld [vmem:[#allocation3 + $0x8] sm:$0xff]
        %v584 = vld [vmem:[#allocation3 + $0x10] sm:$0xff]
        %588 = vrot.lane.b32.xlu0 %v582, 126
        %v589 = vpop.permute.xlu0 %588
        %590 = vrot.lane.b32.xlu0 %v583, 126
        %v591 = vpop.permute.xlu0 %590
        %592 = vrot.lane.b32.xlu0 %v584, 126
        %v593 = vpop.permute.xlu0 %592
        %v594 = vsel %vm306, %v589, %v591
        %v595 = vsel %vm306, %v591, %v593
        %598 = vst [vmem:[#allocation4 + $0x20] sm:$0xff] %v594
        %599 = vst [vmem:[#allocation4 + $0x28] sm:$0xff] %v595
        %v600 = vld [vmem:[#allocation3] sm:$0xff]
        %v601 = vld [vmem:[#allocation3 + $0x8] sm:$0xff]
        %v602 = vld [vmem:[#allocation3 + $0x10] sm:$0xff]
        %606 = vrot.lane.b32.xlu0 %v600, 125
        %v607 = vpop.permute.xlu0 %606
        %608 = vrot.lane.b32.xlu0 %v601, 125
        %v609 = vpop.permute.xlu0 %608
        %610 = vrot.lane.b32.xlu0 %v602, 125
        %v611 = vpop.permute.xlu0 %610
        %v612 = vsel %vm319, %v607, %v609
        %v613 = vsel %vm319, %v609, %v611
        %616 = vst [vmem:[#allocation4 + $0x30] sm:$0xff] %v612
        %617 = vst [vmem:[#allocation4 + $0x38] sm:$0xff] %v613
        %v618 = vld [vmem:[#allocation3] sm:$0xff]
        %v619 = vld [vmem:[#allocation3 + $0x8] sm:$0xff]
        %v620 = vld [vmem:[#allocation3 + $0x10] sm:$0xff]
        %624 = vrot.lane.b32.xlu0 %v618, 124
        %v625 = vpop.permute.xlu0 %624
        %626 = vrot.lane.b32.xlu0 %v619, 124
        %v627 = vpop.permute.xlu0 %626
        %628 = vrot.lane.b32.xlu0 %v620, 124
        %v629 = vpop.permute.xlu0 %628
        %v630 = vsel %vm332, %v625, %v627
        %v631 = vsel %vm332, %v627, %v629
        %634 = vst [vmem:[#allocation4 + $0x40] sm:$0xff] %v630
        %635 = vst [vmem:[#allocation4 + $0x48] sm:$0xff] %v631
        %v636 = vld [vmem:[#allocation3] sm:$0xff]
        %v637 = vld [vmem:[#allocation3 + $0x8] sm:$0xff]
        %v638 = vld [vmem:[#allocation3 + $0x10] sm:$0xff]
        %642 = vrot.lane.b32.xlu0 %v636, 123
        %v643 = vpop.permute.xlu0 %642
        %644 = vrot.lane.b32.xlu0 %v637, 123
        %v645 = vpop.permute.xlu0 %644
        %646 = vrot.lane.b32.xlu0 %v638, 123
        %v647 = vpop.permute.xlu0 %646
        %v648 = vsel %vm345, %v643, %v645
        %v649 = vsel %vm345, %v645, %v647
        %652 = vst [vmem:[#allocation4 + $0x50] sm:$0xff] %v648
        %653 = vst [vmem:[#allocation4 + $0x58] sm:$0xff] %v649
        %v654 = vld [vmem:[#allocation3] sm:$0xff]
        %v655 = vld [vmem:[#allocation3 + $0x8] sm:$0xff]
        %v656 = vld [vmem:[#allocation3 + $0x10] sm:$0xff]
        %660 = vrot.lane.b32.xlu0 %v654, 122
        %v661 = vpop.permute.xlu0 %660
        %662 = vrot.lane.b32.xlu0 %v655, 122
        %v663 = vpop.permute.xlu0 %662
        %664 = vrot.lane.b32.xlu0 %v656, 122
        %v665 = vpop.permute.xlu0 %664
        %v666 = vsel %vm358, %v661, %v663
        %v667 = vsel %vm358, %v663, %v665
        %670 = vst [vmem:[#allocation4 + $0x60] sm:$0xff] %v666
        %671 = vst [vmem:[#allocation4 + $0x68] sm:$0xff] %v667
        %v672 = vld [vmem:[%s4] sm:$0xff]
        %v673 = vld [vmem:[#allocation4] sm:$0xff]
        %v674 = vld [vmem:[#allocation4 + $0x8] sm:$0xff]
        %v675 = vld [vmem:[#allocation4 + $0x10] sm:$0xff]
        %v676 = vld [vmem:[#allocation4 + $0x18] sm:$0xff]
        %v677 = vld [vmem:[#allocation4 + $0x20] sm:$0xff]
        %v678 = vld [vmem:[#allocation4 + $0x28] sm:$0xff]
        %v679 = vld [vmem:[#allocation4 + $0x30] sm:$0xff]
        %v680 = vld [vmem:[#allocation4 + $0x38] sm:$0xff]
        %v681 = vld [vmem:[#allocation4 + $0x40] sm:$0xff]
        %v682 = vld [vmem:[#allocation4 + $0x48] sm:$0xff]
        %v683 = vld [vmem:[#allocation4 + $0x50] sm:$0xff]
        %v684 = vld [vmem:[#allocation4 + $0x58] sm:$0xff]
        %v685 = vld [vmem:[#allocation4 + $0x60] sm:$0xff]
        %v686 = vld [vmem:[#allocation4 + $0x68] sm:$0xff]
        %vm687 = vcmask 457728
        %v689 = vsel %vm687, %v672, 0
        %691 = vmatprep.subr.mxu0 %v674
        %692 = vmatpush1.msra.mxu0 %v673
        %693 = vmatprep.subr.mxu0 %v676
        %694 = vmatpush1.msra.mxu0 %v675
        %695 = vmatprep.subr.mxu0 %v678
        %696 = vmatpush1.msra.mxu0 %v677
        %697 = vmatprep.subr.mxu0 %v680
        %698 = vmatpush1.msra.mxu0 %v679
        %699 = vmatprep.subr.mxu0 %v682
        %700 = vmatpush1.msra.mxu0 %v681
        %701 = vmatprep.subr.mxu0 %v684
        %702 = vmatpush1.msra.mxu0 %v683
        %703 = vmatprep.subr.mxu0 %v686
        %704 = vmatpush1.msra.mxu0 %v685
        %705 = vmatprep.subr.mxu0 0.0
        %706 = vmatpush1.msra.mxu0 0.0
        %707 = vmatprep.subr.mxu0 0.0
        %708 = vmatpush1.msra.mxu0 0.0
        %709 = vmatprep.subr.mxu0 0.0
        %710 = vmatpush1.msra.mxu0 0.0
        %711 = vmatprep.subr.mxu0 0.0
        %712 = vmatpush1.msra.mxu0 0.0
        %713 = vmatprep.subr.mxu0 0.0
        %714 = vmatpush1.msra.mxu0 0.0
        %715 = vmatprep.subr.mxu0 0.0
        %716 = vmatpush1.msra.mxu0 0.0
        %717 = vmatprep.subr.mxu0 0.0
        %718 = vmatpush1.msra.mxu0 0.0
        %719 = vmatprep.subr.mxu0 0.0
        %720 = vmatpush1.msra.mxu0 0.0
        %721 = vmatprep.subr.mxu0 0.0
        %722 = vmatpush1.msra.mxu0 0.0
        %723 = vmatprep.subr.mxu0 0.0
        %724 = vmatpush1.msra.mxu0 0.0
        %725 = vmatprep.subr.mxu0 0.0
        %726 = vmatpush1.msra.mxu0 0.0
        %727 = vmatprep.subr.mxu0 0.0
        %728 = vmatpush1.msra.mxu0 0.0
        %729 = vmatprep.subr.mxu0 0.0
        %730 = vmatpush1.msra.mxu0 0.0
        %731 = vmatprep.subr.mxu0 0.0
        %732 = vmatpush1.msra.mxu0 0.0
        %733 = vmatprep.subr.mxu0 0.0
        %734 = vmatpush1.msra.mxu0 0.0
        %735 = vmatprep.subr.mxu0 0.0
        %736 = vmatpush1.msra.mxu0 0.0
        %737 = vmatprep.subr.mxu0 0.0
        %738 = vmatpush1.msra.mxu0 0.0
        %739 = vmatprep.subr.mxu0 0.0
        %740 = vmatpush1.msra.mxu0 0.0
        %741 = vmatprep.subr.mxu0 0.0
        %742 = vmatpush1.msra.mxu0 0.0
        %743 = vmatprep.subr.mxu0 0.0
        %744 = vmatpush1.msra.mxu0 0.0
        %745 = vmatprep.subr.mxu0 0.0
        %746 = vmatpush1.msra.mxu0 0.0
        %747 = vmatprep.subr.mxu0 0.0
        %748 = vmatpush1.msra.mxu0 0.0
        %749 = vmatprep.subr.mxu0 0.0
        %750 = vmatpush1.msra.mxu0 0.0
        %751 = vmatprep.subr.mxu0 0.0
        %752 = vmatpush1.msra.mxu0 0.0
        %753 = vmatprep.subr.mxu0 0.0
        %754 = vmatpush1.msra.mxu0 0.0
        %755 = vmatprep.mubr.f32.mxu0 0.0
        %756 = vmatmul.mubr.f32.gmra.mrb[0].mxu0 %v689
        %v757 = vpop.f32.mrb[0].mxu0
        %v758 = vadd.f32 0.0, %v757
        %v759 = vpop.f32.mrb[0].mxu0
        %v760 = vadd.f32 0.0, %v759
        %761 = vdwg.mxu0
        %v762 = vld [vmem:[%s5] sm:$0xff]
        %764 = vset.pattern.permute.xlu0 0
        %765 = vperm.xlu0 %764, %v762
        %v766 = vpop.permute.xlu0 %765
        %v768 = vmul.f32 %v758, %v766
        %v769 = vmul.f32 %v760, %v766
        %v770 = vld [vmem:[%s6] sm:$0xff]
        %772 = vset.pattern.permute.xlu0 0
        %773 = vperm.xlu0 %772, %v770
        %v774 = vpop.permute.xlu0 %773
        %v776 = vadd.f32 %v768, %v774
        %v777 = vadd.f32 %v769, %v774
        %vm778 = vcmp.ge.f32.partialorder %v776, 0.0
        %vm779 = vcmp.ge.f32.partialorder %v777, 0.0
        %v780 = vmul.f32 %v776, 0.01
        %v781 = vmul.f32 %v777, 0.01
        %v782 = vsel %vm778, %v776, %v780
        %v783 = vsel %vm779, %v777, %v781
        %784 = vst [vmem:[%s271] sm:$0xff] %v782
        %785 = vst [vmem:[%s271 + $0x8] sm:$0xff] %v783
        %s786 = sand.u32 %s181, 1
        %s787 = scalar_lea.sflag [#allocation6], %s786
        %s788 = sand.u32 %s181, 1
        %s789 = smul.addr %s788, 16
        %s790 = scalar_lea.vmem [#allocation5], %s789
        // Predicated region
        $region49: #{double_conv.1} parent=47 // pred_check
          %p791 = pneg %p191
        $region50: #{double_conv.1} parent=47 // pred_check_branch
          %793 = sbr.rel (%p791) target = $region52
        $region51: #{double_conv.1} parent=47 // pred_region
          %s795 = ssub.s32 256, 256
          %796 = vsyncadd %s787, %s795
          %s797 = smul.addr %s21, 2
          %s798 = smul.addr %s797, 128
          %s799 = scalar_lea.hbm %s7, %s798
          %s801 = sshll.u32 %s790, 4
          %s802 = int_to_ptr.vmem [resolvable:$true] %s801
          %804 = dma.vmem_to_hbm [thread:$0]  %s802, 256, %s799, %s787
        $region52: #{double_conv.1} parent=47 // pred_fallthru
          _
      $region48: #{double_conv.1} parent=5 // pred_fallthru
        _
      %p805 = scmp.le.s32.totalorder 2, %s16
      // Predicated region
      $region53: #{double_conv.1} parent=5 // pred_check
        %p806 = pneg %p805
      $region54: #{double_conv.1} parent=5 // pred_check_branch
        %808 = sbr.rel (%p806) target = $region56
      $region55: #{double_conv.1} parent=5 // pred_region
        %s809 = ssub.s32 %s16, 2
        // Predicated region
        $region57: #{double_conv.1} parent=55 // pred_check
          %p810 = pneg %p197
        $region58: #{double_conv.1} parent=55 // pred_check_branch
          %812 = sbr.rel (%p810) target = $region60
        $region59: #{double_conv.1} parent=55 // pred_region
          %s813 = sand.u32 %s182, 1
          %s814 = scalar_lea.sflag [#allocation6], %s813
          %s815 = sand.u32 %s182, 1
          %s816 = smul.addr %s815, 16
          %s817 = scalar_lea.vmem [#allocation5], %s816
          %818 = dma.done %s814, 256
        $region60: #{double_conv.1} parent=55 // pred_fallthru
          _
      $region56: #{double_conv.1} parent=5 // pred_fallthru
        _
    $region6: #{double_conv.1} parent=1 // loop_footer
      %s20 = sadd.s32 1, %s16
    $region7: #{double_conv.1} parent=1 // loop_footer_branch
      %15 = sbr.rel target = $region3
    $region8: #{double_conv.1} parent=1 // loop_exit
      _
    %819 = vsyncpa [#allocation6], 1
    %s820 = scalar_lea.sflag [#allocation6], 1
    %821 = vsyncpa %s820, 1

</llo_original>
